<compile_context>
chip_gen: v7x
topology: tpu7x:2x2x1
jax: 0.10.0
libtpu: 0.0.40
codegen_flags: <defaults>
</compile_context>

<pallas_src>
import jax
import jax.numpy as jnp
from jax.experimental import pallas as pl
from jax.experimental.pallas import tpu as pltpu


def _attention_kernel(x_ref, w_ref, b_ref, o_ref):
    # x_ref: (Bt, N, D) VMEM   w_ref: (1, D) VMEM (resident across steps)
    # b_ref: (1,) SMEM         o_ref: (Bt, D) VMEM
    x = x_ref[...]                                    # (Bt, N, D), input dtype
    w = w_ref[...]                                    # (1, D)
    b = b_ref[0]                                      # scalar bias from SMEM

    # Linear(D -> 1): VPU multiply + lane reduction over D, f32 accumulation.
    # keepdims keeps N on the sublane axis, so the softmax weights broadcast
    # against x along lanes without a lane<->sublane relayout.
    scores = jnp.sum(x * w, axis=-1, keepdims=True,
                     dtype=jnp.float32) + b           # (Bt, N, 1)

    # Numerically stable softmax over the instance axis N.
    m = jnp.max(scores, axis=1, keepdims=True)        # (Bt, 1, 1)
    p = jnp.exp(scores - m)                           # (Bt, N, 1), f32
    denom = jnp.sum(p, axis=1, keepdims=True)         # (Bt, 1, 1)

    # Weighted sum over instances: p kept in f32, f32 accumulation, one exact
    # division at the end (flash-attention-style late normalisation).
    acc = jnp.sum(p * x, axis=1, dtype=jnp.float32)   # (Bt, D)
    out = acc / denom.reshape(acc.shape[0], 1)        # (Bt, D)
    o_ref[...] = out.astype(o_ref.dtype)


def _round_up(x, m):
    return ((x + m - 1) // m) * m


def _vmem_capacity_bytes():
    """Physical VMEM of the current TPU generation, with a safe fallback."""
    try:
        cap = getattr(pltpu.get_tpu_info(), "vmem_capacity_bytes", None)
        if cap:
            return int(cap)
    except Exception:
        pass
    return 64 * 1024 * 1024  # v7x-sized fallback: safe on every generation


def attention_forward(x, w, b, *, block_b=None):
    """MIL attention pooling.

    x: (B, N, D) bags of N instances with D features.
    w: (1, D)    nn.Linear(D, 1).weight (native PyTorch layout).
    b: (1,)      nn.Linear(D, 1).bias.
    Returns (B, D).
    """
    B, N, D = x.shape
    assert w.shape == (1, D) and b.shape == (1,)

    itemsize = jnp.dtype(x.dtype).itemsize
    sublane = max(8, 32 // itemsize)                  # 8 f32 / 16 bf16 / 32 int8

    # Per-generation VMEM sizing (v7x: 64 MiB physical, v5e/v6e: 128 MiB).
    vmem_cap = _vmem_capacity_bytes()
    vmem_limit = min(int(vmem_cap * 3 // 4), 112 * 1024 * 1024)

    # Layout-padded per-bag footprint: double-buffered input block, the f32
    # (Bt, N, D) intermediate of the weighted sum (p * x), and the output row.
    # Small-D bags are lane-padded to 128, which the budget reflects.
    bag_in = _round_up(N, sublane) * _round_up(D, 128) * itemsize
    bag_tmp = _round_up(N, 8) * _round_up(D, 128) * 4
    bag_out = 2 * _round_up(D, 128) * itemsize
    per_bag = 2 * bag_in + bag_tmp + bag_out

    if block_b is None:
        budget = max(vmem_limit - 2 * 1024 * 1024, per_bag)  # headroom
        block_b = max(8, (budget // per_bag) // 8 * 8)
    else:
        block_b = max(8, _round_up(block_b, 8))

    b_pad_unit = _round_up(B, 8)
    if b_pad_unit >= 16:
        # Keep >= 2 grid steps so v7x's second TensorCore has work
        # (the batch axis is marked "parallel"); neutral on v5e/v6e.
        block_b = min(block_b, max(8, (b_pad_unit // 2) // 8 * 8))
    block_b = min(block_b, b_pad_unit)                # don't over-pad tiny batches

    B_pad = _round_up(B, block_b)
    if B_pad != B:
        # Padded zero bags: uniform softmax over zero instances -> zero rows,
        # sliced off below.
        x = jnp.pad(x, ((0, B_pad - B), (0, 0), (0, 0)))

    cost = pl.CostEstimate(
        flops=int(4 * B_pad * N * D),                 # score mul/add + weighted mul/add
        transcendentals=int(B_pad * N),               # exp
        bytes_accessed=int(B_pad * N * D * itemsize
                           + B_pad * D * itemsize
                           + D * itemsize),
    )

    out = pl.pallas_call(
        _attention_kernel,
        out_shape=jax.ShapeDtypeStruct((B_pad, D), x.dtype),
        grid_spec=pltpu.PrefetchScalarGridSpec(
            num_scalar_prefetch=0,
            grid=(B_pad // block_b,),
            in_specs=[
                # block_b bags per grid step (multi-MiB, HBM-roofline tiles).
                pl.BlockSpec((block_b, N, D), lambda bi: (bi, 0, 0)),
                # Weight stays resident (constant block index).
                pl.BlockSpec((1, D), lambda bi: (0, 0)),
                # Scalar bias in SMEM (no VMEM tile / extra DMA stream).
                pl.BlockSpec(memory_space=pltpu.MemorySpace.SMEM),
            ],
            out_specs=pl.BlockSpec((block_b, D), lambda bi: (bi, 0)),
        ),
        compiler_params=pltpu.CompilerParams(
            # Batch axis is embarrassingly parallel -> v7x can shard grid steps
            # across its two TensorCores; neutral on v5e/v6e.
            dimension_semantics=("parallel",),
            vmem_limit_bytes=vmem_limit,
        ),
        cost_estimate=cost,
    )(x, w, b)
    return out[:B]


def attention_reference(x, w, b):
    # HIGHEST precision so the f32 reference matmul is not silently done in
    # bf16 on the MXU (which would pollute the correctness comparison).
    scores = jnp.einsum("bnd,od->bno", x, w,
                        precision=jax.lax.Precision.HIGHEST) + b     # (B, N, 1)
    attn = jax.nn.softmax(scores, axis=1)
    return jnp.sum(attn * x, axis=1)                                 # (B, D)


if __name__ == "__main__":
    key = jax.random.PRNGKey(0)

    def run_case(B, N, D, case_key):
        kx, kw, kb = jax.random.split(case_key, 3)
        x = jax.random.normal(kx, (B, N, D), dtype=jnp.float32)
        bound = 1.0 / (D ** 0.5)
        w = jax.random.uniform(kw, (1, D), minval=-bound, maxval=bound,
                               dtype=jnp.float32)
        b = jax.random.uniform(kb, (1,), minval=-bound, maxval=bound,
                               dtype=jnp.float32)

        out = jax.block_until_ready(attention_forward(x, w, b))
        ref = attention_reference(x, w, b)
        assert out.shape == (B, D)
        err = float(jnp.max(jnp.abs(out - ref)))
        assert jnp.allclose(out, ref, atol=3e-5, rtol=3e-5), (
            f"mismatch vs reference for shape {(B, N, D)}: max abs err {err:.3e}")

    k1, k2, k3 = jax.random.split(key, 3)
    run_case(2, 8, 32, k1)      # small shape matching the module's usage
    run_case(10, 16, 128, k2)   # batch padding + lane-dense D + 2-step grid
    run_case(24, 8, 32, k3)     # multi-step grid + small-D lane padding
    print("KERNEL_OK")
</pallas_src>

<mosaic_0001>
module attributes {stable_mosaic.version = 11 : i64} {
  func.func @_attention_kernel(%arg0: i32, %arg1: memref<8x8x32xf32, #tpu.memory_space<vmem>>, %arg2: memref<1x32xf32, #tpu.memory_space<vmem>>, %arg3: memref<1xf32, #tpu.memory_space<smem>>, %arg4: memref<8x32xf32, #tpu.memory_space<vmem>>) attributes {dimension_semantics = [#tpu.dimension_semantics<parallel>], iteration_bounds = array<i64: 1>, scalar_prefetch = 0 : i64, scratch_operands = 0 : i64, tpu.core_type = #tpu.core_type<tc>, window_params = [{transform_indices = @transform_0, window_bounds = array<i64: 8, 8, 32>}, {pipeline_mode = #tpu.pipeline_mode<synchronous>, transform_indices = @transform_1, window_bounds = array<i64: 1, 32>}, {transform_indices = @transform_2, window_bounds = array<i64: 1>}, {transform_indices = @transform_3, window_bounds = array<i64: 8, 32>}]} {
    %c0 = arith.constant 0 : index
    %c0_0 = arith.constant 0 : index
    %c0_1 = arith.constant 0 : index
    %0 = vector.load %arg1[%c0, %c0_0, %c0_1] : memref<8x8x32xf32, #tpu.memory_space<vmem>>, vector<8x8x32xf32>
    %c0_2 = arith.constant 0 : index
    %c0_3 = arith.constant 0 : index
    %1 = vector.load %arg2[%c0_2, %c0_3] : memref<1x32xf32, #tpu.memory_space<vmem>>, vector<1x32xf32>
    %c0_4 = arith.constant 0 : index
    %2 = memref.load %arg3[%c0_4] : memref<1xf32, #tpu.memory_space<smem>>
    %3 = vector.shape_cast %1 : vector<1x32xf32> to vector<1x1x32xf32>
    %4 = vector.broadcast %3 : vector<1x1x32xf32> to vector<8x8x32xf32>
    %5 = arith.mulf %0, %4 : vector<8x8x32xf32>
    %cst = arith.constant dense<0.000000e+00> : vector<8x8xf32>
    %6 = vector.multi_reduction <add>, %5, %cst [2] : vector<8x8x32xf32> to vector<8x8xf32>
    %7 = vector.shape_cast %6 : vector<8x8xf32> to vector<8x8x1xf32>
    %8 = vector.broadcast %2 : f32 to vector<8x8x1xf32>
    %9 = arith.addf %7, %8 : vector<8x8x1xf32>
    %cst_5 = arith.constant dense<0xFF800000> : vector<8x1xf32>
    %10 = vector.multi_reduction <maximumf>, %9, %cst_5 [1] : vector<8x8x1xf32> to vector<8x1xf32>
    %11 = vector.shape_cast %10 : vector<8x1xf32> to vector<8x1x1xf32>
    %12 = vector.broadcast %11 : vector<8x1x1xf32> to vector<8x8x1xf32>
    %13 = arith.subf %9, %12 : vector<8x8x1xf32>
    %14 = math.exp %13 : vector<8x8x1xf32>
    %cst_6 = arith.constant dense<0.000000e+00> : vector<8x1xf32>
    %15 = vector.multi_reduction <add>, %14, %cst_6 [1] : vector<8x8x1xf32> to vector<8x1xf32>
    %16 = vector.shape_cast %15 : vector<8x1xf32> to vector<8x1x1xf32>
    %17 = vector.broadcast %14 : vector<8x8x1xf32> to vector<8x8x32xf32>
    %18 = arith.mulf %17, %0 : vector<8x8x32xf32>
    %cst_7 = arith.constant dense<0.000000e+00> : vector<8x32xf32>
    %19 = vector.multi_reduction <add>, %18, %cst_7 [1] : vector<8x8x32xf32> to vector<8x32xf32>
    %20 = vector.shape_cast %16 : vector<8x1x1xf32> to vector<8x1xf32>
    %21 = vector.broadcast %20 : vector<8x1xf32> to vector<8x32xf32>
    %22 = arith.divf %19, %21 : vector<8x32xf32>
    %c0_8 = arith.constant 0 : index
    %c0_9 = arith.constant 0 : index
    %23 = vector.load %arg4[%c0_8, %c0_9] : memref<8x32xf32, #tpu.memory_space<vmem>>, vector<8x32xf32>
    tpu.vector_store %arg4[%c0_8, %c0_9], %22 {strides = array<i32>} : memref<8x32xf32, #tpu.memory_space<vmem>>, vector<8x32xf32>,
    return
  }
  func.func @transform_0(%arg0: i32) -> (i32, i32, i32) {
    %c0_i32 = arith.constant 0 : i32
    %c0_i32_0 = arith.constant 0 : i32
    %c0_i32_1 = arith.constant 0 : i32
    return %arg0, %c0_i32, %c0_i32_0 : i32, i32, i32
  }
  func.func @transform_1(%arg0: i32) -> (i32, i32) {
    %c0_i32 = arith.constant 0 : i32
    %c0_i32_0 = arith.constant 0 : i32
    %c0_i32_1 = arith.constant 0 : i32
    return %c0_i32, %c0_i32_0 : i32, i32
  }
  func.func @transform_2(%arg0: i32) -> i32 {
    %c0_i32 = arith.constant 0 : i32
    %c0_i32_0 = arith.constant 0 : i32
    return %c0_i32 : i32
  }
  func.func @transform_3(%arg0: i32) -> (i32, i32) {
    %c0_i32 = arith.constant 0 : i32
    %c0_i32_0 = arith.constant 0 : i32
    return %arg0, %c0_i32 : i32, i32
  }
}

</mosaic_0001>

<llo_original>
// kernel: tpu_custom_call.1
$region0: #{tpu_custom_call.1}
  #allocation0 [shape = 'u32[]', space=smem, size = 0x4, offset = 0x4, fixed_abs, tag = 'smem constant byte address 0x4 - core index']
  #allocation1 [shape = 'u32[144,128]{1,0:T(1,128)}', space=vmem, size = 0x12000, scoped, tag = 'internal scratch']
  #allocation2 [shape = 'f32[1]{0:T(128)S(6)}', space=smem, size = 0x200, scoped, tag = 'scoped memory for tpu_custom_call.1']
  %s0 = inlined_call_operand.hbm [shape: f32[8,8,32], index: 0, kind: input, shape index: {}]
  %s1 = inlined_call_operand.vmem [shape: f32[1,32], index: 1, kind: input, shape index: {}]
  %s2 = inlined_call_operand.<no memory space> [shape: f32[1], index: 2, kind: input, shape index: {}]
  %s3 = inlined_call_operand.hbm [shape: f32[8,32], index: 3, kind: output, shape index: {}]
  %s4 = sld [smem:[#allocation0]]
  $region26: #{tpu_custom_call.1} parent=0
    _
  %s6 = ssub.s32 1, %s4
  %s7 = scalar_select 0, %s6, %s4
  %8 = sst [smem:[#allocation2]] %s2
  $region1: #{tpu_custom_call.1} parent=0
    #allocation3 [shape = 'u8[32768]{0}', space=vmem, size = 0x8000, scoped, tag = 'input window, operand 0, single buffered']
    #allocation4 [shape = 's32[1]{0}', space=sflag, size = 0x4, scoped, tag = 'scoped memory for tpu_custom_call.1']
    #allocation5 [shape = 's32[1]{0}', space=sflag, size = 0x4, scoped, tag = 'scoped memory for tpu_custom_call.1']
    #allocation6 [shape = 'u8[4096]{0}', space=vmem, size = 0x1000, scoped, tag = 'output window, operand 0, single buffered']
    %9 = vsyncpa [#allocation4], 0
    %10 = vsyncpa [#allocation5], 0
    // Predicated region
    $region2: #{tpu_custom_call.1} parent=1 // pred_check
      _
    $region3: #{tpu_custom_call.1} parent=1 // pred_check_branch
      %12 = sbr.rel (0) target = $region5
    $region4: #{tpu_custom_call.1} parent=1 // pred_region
      %s14 = ssub.s32 1024, 1024
      %15 = vsyncadd [#allocation4], %s14
      %s16 = sshll.u32 [#allocation3], 4
      %s17 = int_to_ptr.vmem [resolvable:$true] %s16
      %22 = dma.hbm_to_vmem [thread:$0]  %s0, 1024, %s17, [#allocation4], 128, 128, 8
    $region5: #{tpu_custom_call.1} parent=1 // pred_fallthru
      _
    // Predicated region
    $region6: #{tpu_custom_call.1} parent=1 // pred_check
      _
    $region7: #{tpu_custom_call.1} parent=1 // pred_check_branch
      %24 = sbr.rel (0) target = $region9
    $region8: #{tpu_custom_call.1} parent=1 // pred_region
      _
    $region9: #{tpu_custom_call.1} parent=1 // pred_fallthru
      _
    // Predicated region
    $region10: #{tpu_custom_call.1} parent=1 // pred_check
      _
    $region11: #{tpu_custom_call.1} parent=1 // pred_check_branch
      %26 = sbr.rel (0) target = $region13
    $region12: #{tpu_custom_call.1} parent=1 // pred_region
      _
    $region13: #{tpu_custom_call.1} parent=1 // pred_fallthru
      _
    // Predicated region
    $region14: #{tpu_custom_call.1} parent=1 // pred_check
      _
    $region15: #{tpu_custom_call.1} parent=1 // pred_check_branch
      %28 = sbr.rel (0) target = $region17
    $region16: #{tpu_custom_call.1} parent=1 // pred_region
      %29 = dma.done [#allocation4], 1024
    $region17: #{tpu_custom_call.1} parent=1 // pred_fallthru
      _
    %v30 = vld [vmem:[#allocation3] sm:$0xff]
    %v31 = vld [vmem:[#allocation3 + $0x8] sm:$0xff]
    %v32 = vld [vmem:[#allocation3 + $0x10] sm:$0xff]
    %v33 = vld [vmem:[#allocation3 + $0x18] sm:$0xff]
    %v34 = vld [vmem:[#allocation3 + $0x20] sm:$0xff]
    %v35 = vld [vmem:[#allocation3 + $0x28] sm:$0xff]
    %v36 = vld [vmem:[#allocation3 + $0x30] sm:$0xff]
    %v37 = vld [vmem:[#allocation3 + $0x38] sm:$0xff]
    %v38 = vld [vmem:[%s1] sm:$0x1]
    %s39 = sld [smem:[#allocation2]]
    %v41 = vlaneseq
    %v42 = vshrl.u32 %v41, 7
    %v43 = vsub.s32 0, %v42
    %v44 = vrot.slane %v38, %v43
    %v46 = vmul.f32 %v30, %v44
    %v47 = vmul.f32 %v31, %v44
    %v48 = vmul.f32 %v32, %v44
    %v49 = vmul.f32 %v33, %v44
    %v50 = vmul.f32 %v34, %v44
    %v51 = vmul.f32 %v35, %v44
    %v52 = vmul.f32 %v36, %v44
    %v53 = vmul.f32 %v37, %v44
    %vm54 = vcmask 261120
    %v55 = vsel %vm54, %v46, 0.0
    %56 = vadd.xlane.f32.xlu0 %v55
    %v57 = vpop.xlane.xlu0 %56
    %v58 = vsel %vm54, %v47, 0.0
    %59 = vadd.xlane.f32.xlu0 %v58
    %v60 = vpop.xlane.xlu0 %59
    %v61 = vsel %vm54, %v48, 0.0
    %62 = vadd.xlane.f32.xlu0 %v61
    %v63 = vpop.xlane.xlu0 %62
    %v64 = vsel %vm54, %v49, 0.0
    %65 = vadd.xlane.f32.xlu0 %v64
    %v66 = vpop.xlane.xlu0 %65
    %v67 = vsel %vm54, %v50, 0.0
    %68 = vadd.xlane.f32.xlu0 %v67
    %v69 = vpop.xlane.xlu0 %68
    %v70 = vsel %vm54, %v51, 0.0
    %71 = vadd.xlane.f32.xlu0 %v70
    %v72 = vpop.xlane.xlu0 %71
    %v73 = vsel %vm54, %v52, 0.0
    %74 = vadd.xlane.f32.xlu0 %v73
    %v75 = vpop.xlane.xlu0 %74
    %v76 = vsel %vm54, %v53, 0.0
    %77 = vadd.xlane.f32.xlu0 %v76
    %v78 = vpop.xlane.xlu0 %77
    %v79 = vstv %s39
    %v80 = vadd.f32 %v57, %v79
    %v81 = vadd.f32 %v60, %v79
    %v82 = vadd.f32 %v63, %v79
    %v83 = vadd.f32 %v66, %v79
    %v84 = vadd.f32 %v69, %v79
    %v85 = vadd.f32 %v72, %v79
    %v86 = vadd.f32 %v75, %v79
    %v87 = vadd.f32 %v78, %v79
    %v88 = vrot.slane %v80, 4
    %v89 = vmax.f32 %v80, %v88
    %v90 = vrot.slane %v89, 2
    %v91 = vmax.f32 %v89, %v90
    %v92 = vrot.slane %v91, 1
    %v93 = vmax.f32 %v91, %v92
    %v94 = vrot.slane %v81, 4
    %v95 = vmax.f32 %v81, %v94
    %v96 = vrot.slane %v95, 2
    %v97 = vmax.f32 %v95, %v96
    %v98 = vrot.slane %v97, 1
    %v99 = vmax.f32 %v97, %v98
    %v100 = vrot.slane %v82, 4
    %v101 = vmax.f32 %v82, %v100
    %v102 = vrot.slane %v101, 2
    %v103 = vmax.f32 %v101, %v102
    %v104 = vrot.slane %v103, 1
    %v105 = vmax.f32 %v103, %v104
    %v106 = vrot.slane %v83, 4
    %v107 = vmax.f32 %v83, %v106
    %v108 = vrot.slane %v107, 2
    %v109 = vmax.f32 %v107, %v108
    %v110 = vrot.slane %v109, 1
    %v111 = vmax.f32 %v109, %v110
    %v112 = vrot.slane %v84, 4
    %v113 = vmax.f32 %v84, %v112
    %v114 = vrot.slane %v113, 2
    %v115 = vmax.f32 %v113, %v114
    %v116 = vrot.slane %v115, 1
    %v117 = vmax.f32 %v115, %v116
    %v118 = vrot.slane %v85, 4
    %v119 = vmax.f32 %v85, %v118
    %v120 = vrot.slane %v119, 2
    %v121 = vmax.f32 %v119, %v120
    %v122 = vrot.slane %v121, 1
    %v123 = vmax.f32 %v121, %v122
    %v124 = vrot.slane %v86, 4
    %v125 = vmax.f32 %v86, %v124
    %v126 = vrot.slane %v125, 2
    %v127 = vmax.f32 %v125, %v126
    %v128 = vrot.slane %v127, 1
    %v129 = vmax.f32 %v127, %v128
    %v130 = vrot.slane %v87, 4
    %v131 = vmax.f32 %v87, %v130
    %v132 = vrot.slane %v131, 2
    %v133 = vmax.f32 %v131, %v132
    %v134 = vrot.slane %v133, 1
    %v135 = vmax.f32 %v133, %v134
    %v136 = vsub.f32 %v80, %v93
    %v137 = vsub.f32 %v81, %v99
    %v138 = vsub.f32 %v82, %v105
    %v139 = vsub.f32 %v83, %v111
    %v140 = vsub.f32 %v84, %v117
    %v141 = vsub.f32 %v85, %v123
    %v142 = vsub.f32 %v86, %v129
    %v143 = vsub.f32 %v87, %v135
    %v144 = vmul.f32 %v136, 1.442695
    %v145 = vpow.pop %v144
    %v146 = vmul.f32 %v137, 1.442695
    %v147 = vpow.pop %v146
    %v148 = vmul.f32 %v138, 1.442695
    %v149 = vpow.pop %v148
    %v150 = vmul.f32 %v139, 1.442695
    %v151 = vpow.pop %v150
    %v152 = vmul.f32 %v140, 1.442695
    %v153 = vpow.pop %v152
    %v154 = vmul.f32 %v141, 1.442695
    %v155 = vpow.pop %v154
    %v156 = vmul.f32 %v142, 1.442695
    %v157 = vpow.pop %v156
    %v158 = vmul.f32 %v143, 1.442695
    %v159 = vpow.pop %v158
    %v160 = vrot.slane %v145, 4
    %v161 = vadd.f32 %v145, %v160
    %v162 = vrot.slane %v161, 2
    %v163 = vadd.f32 %v161, %v162
    %v164 = vrot.slane %v163, 1
    %v165 = vadd.f32 %v163, %v164
    %v166 = vrot.slane %v147, 4
    %v167 = vadd.f32 %v147, %v166
    %v168 = vrot.slane %v167, 2
    %v169 = vadd.f32 %v167, %v168
    %v170 = vrot.slane %v169, 1
    %v171 = vadd.f32 %v169, %v170
    %v172 = vrot.slane %v149, 4
    %v173 = vadd.f32 %v149, %v172
    %v174 = vrot.slane %v173, 2
    %v175 = vadd.f32 %v173, %v174
    %v176 = vrot.slane %v175, 1
    %v177 = vadd.f32 %v175, %v176
    %v178 = vrot.slane %v151, 4
    %v179 = vadd.f32 %v151, %v178
    %v180 = vrot.slane %v179, 2
    %v181 = vadd.f32 %v179, %v180
    %v182 = vrot.slane %v181, 1
    %v183 = vadd.f32 %v181, %v182
    %v184 = vrot.slane %v153, 4
    %v185 = vadd.f32 %v153, %v184
    %v186 = vrot.slane %v185, 2
    %v187 = vadd.f32 %v185, %v186
    %v188 = vrot.slane %v187, 1
    %v189 = vadd.f32 %v187, %v188
    %v190 = vrot.slane %v155, 4
    %v191 = vadd.f32 %v155, %v190
    %v192 = vrot.slane %v191, 2
    %v193 = vadd.f32 %v191, %v192
    %v194 = vrot.slane %v193, 1
    %v195 = vadd.f32 %v193, %v194
    %v196 = vrot.slane %v157, 4
    %v197 = vadd.f32 %v157, %v196
    %v198 = vrot.slane %v197, 2
    %v199 = vadd.f32 %v197, %v198
    %v200 = vrot.slane %v199, 1
    %v201 = vadd.f32 %v199, %v200
    %v202 = vrot.slane %v159, 4
    %v203 = vadd.f32 %v159, %v202
    %v204 = vrot.slane %v203, 2
    %v205 = vadd.f32 %v203, %v204
    %v206 = vrot.slane %v205, 1
    %v207 = vadd.f32 %v205, %v206
    %v208 = vmul.f32 %v145, %v30
    %v209 = vmul.f32 %v147, %v31
    %v210 = vmul.f32 %v149, %v32
    %v211 = vmul.f32 %v151, %v33
    %v212 = vmul.f32 %v153, %v34
    %v213 = vmul.f32 %v155, %v35
    %v214 = vmul.f32 %v157, %v36
    %v215 = vmul.f32 %v159, %v37
    %v216 = vsel %vm54, %v208, 0.0
    %v217 = vrot.slane %v216, 4
    %v218 = vadd.f32 %v216, %v217
    %v219 = vrot.slane %v218, 2
    %v220 = vadd.f32 %v218, %v219
    %v221 = vrot.slane %v220, 1
    %v222 = vadd.f32 %v220, %v221
    %v223 = vsel %vm54, %v209, 0.0
    %v224 = vrot.slane %v223, 4
    %v225 = vadd.f32 %v223, %v224
    %v226 = vrot.slane %v225, 2
    %v227 = vadd.f32 %v225, %v226
    %v228 = vrot.slane %v227, 1
    %v229 = vadd.f32 %v227, %v228
    %v230 = vsel %vm54, %v210, 0.0
    %v231 = vrot.slane %v230, 4
    %v232 = vadd.f32 %v230, %v231
    %v233 = vrot.slane %v232, 2
    %v234 = vadd.f32 %v232, %v233
    %v235 = vrot.slane %v234, 1
    %v236 = vadd.f32 %v234, %v235
    %v237 = vsel %vm54, %v211, 0.0
    %v238 = vrot.slane %v237, 4
    %v239 = vadd.f32 %v237, %v238
    %v240 = vrot.slane %v239, 2
    %v241 = vadd.f32 %v239, %v240
    %v242 = vrot.slane %v241, 1
    %v243 = vadd.f32 %v241, %v242
    %v244 = vsel %vm54, %v212, 0.0
    %v245 = vrot.slane %v244, 4
    %v246 = vadd.f32 %v244, %v245
    %v247 = vrot.slane %v246, 2
    %v248 = vadd.f32 %v246, %v247
    %v249 = vrot.slane %v248, 1
    %v250 = vadd.f32 %v248, %v249
    %v251 = vsel %vm54, %v213, 0.0
    %v252 = vrot.slane %v251, 4
    %v253 = vadd.f32 %v251, %v252
    %v254 = vrot.slane %v253, 2
    %v255 = vadd.f32 %v253, %v254
    %v256 = vrot.slane %v255, 1
    %v257 = vadd.f32 %v255, %v256
    %v258 = vsel %vm54, %v214, 0.0
    %v259 = vrot.slane %v258, 4
    %v260 = vadd.f32 %v258, %v259
    %v261 = vrot.slane %v260, 2
    %v262 = vadd.f32 %v260, %v261
    %v263 = vrot.slane %v262, 1
    %v264 = vadd.f32 %v262, %v263
    %v265 = vsel %vm54, %v215, 0.0
    %v266 = vrot.slane %v265, 4
    %v267 = vadd.f32 %v265, %v266
    %v268 = vrot.slane %v267, 2
    %v269 = vadd.f32 %v267, %v268
    %v270 = vrot.slane %v269, 1
    %v271 = vadd.f32 %v269, %v270
    %v272 = vrcp.pop %v165
    %v273 = vmul.f32 %v222, %v272
    %v274 = vrcp.pop %v171
    %v275 = vmul.f32 %v229, %v274
    %v276 = vrcp.pop %v177
    %v277 = vmul.f32 %v236, %v276
    %v278 = vrcp.pop %v183
    %v279 = vmul.f32 %v243, %v278
    %v280 = vrcp.pop %v189
    %v281 = vmul.f32 %v250, %v280
    %v282 = vrcp.pop %v195
    %v283 = vmul.f32 %v257, %v282
    %v284 = vrcp.pop %v201
    %v285 = vmul.f32 %v264, %v284
    %v286 = vrcp.pop %v207
    %v287 = vmul.f32 %v271, %v286
    %vm296 = vcmask 1041409
    %v297 = vsel %vm296, %v275, %v273
    %vm298 = vcmask 1042434
    %v299 = vsel %vm298, %v277, %v297
    %vm300 = vcmask 1043459
    %v301 = vsel %vm300, %v279, %v299
    %vm302 = vcmask 1044484
    %v303 = vsel %vm302, %v281, %v301
    %vm304 = vcmask 1045509
    %v305 = vsel %vm304, %v283, %v303
    %vm306 = vcmask 1046534
    %v307 = vsel %vm306, %v285, %v305
    %vm308 = vcmask 1047559
    %v309 = vsel %vm308, %v287, %v307
    %311 = vst.msk [vmem:[#allocation6] sm:$0xff] %vm54, %v309
    // Predicated region
    $region18: #{tpu_custom_call.1} parent=1 // pred_check
      _
    $region19: #{tpu_custom_call.1} parent=1 // pred_check_branch
      %313 = sbr.rel (0) target = $region21
    $region20: #{tpu_custom_call.1} parent=1 // pred_region
      %s315 = ssub.s32 128, 128
      %316 = vsyncadd [#allocation5], %s315
      %s318 = sshll.u32 [#allocation6], 4
      %s319 = int_to_ptr.vmem [resolvable:$true] %s318
      %321 = dma.vmem_to_hbm [thread:$0]  %s319, 128, %s3, [#allocation5]
    $region21: #{tpu_custom_call.1} parent=1 // pred_fallthru
      _
    // Predicated region
    $region22: #{tpu_custom_call.1} parent=1 // pred_check
      _
    $region23: #{tpu_custom_call.1} parent=1 // pred_check_branch
      %323 = sbr.rel (0) target = $region25
    $region24: #{tpu_custom_call.1} parent=1 // pred_region
      %324 = dma.done [#allocation5], 128
    $region25: #{tpu_custom_call.1} parent=1 // pred_fallthru
      _
    %325 = vsyncpa [#allocation4], 1
    %326 = vsyncpa [#allocation5], 1

</llo_original>
